<compile_context>
chip_gen: v6e
topology: v6e:2x2x1
jax: 0.10.0
libtpu: 0.0.40
codegen_flags: <defaults>
</compile_context>

<pallas_src>
import jax
import jax.numpy as jnp
from jax.experimental import pallas as pl
from jax.experimental.pallas import tpu as pltpu


# ----------------------------- Pallas kernel --------------------------------

def critic_kernel(x_ref, w1_ref, wh_ref, w6_ref, b_ref, o_ref):
    f32 = jnp.float32
    act = w1_ref.dtype                 # activation dtype follows the weights

    def swish(z):
        # z * sigmoid(z) == 0.5 * z * (1 + tanh(z/2)): single EUP push.
        half = jnp.asarray(0.5, z.dtype)
        one = jnp.asarray(1.0, z.dtype)
        return half * z * (one + jnp.tanh(half * z))

    bias = b_ref[...].astype(act)      # (H, 6) -- tiny, cast once per tile

    # fc1: W1 (H, S) contracted with x (TILE_B, S) on S  ->  (H, TILE_B).
    # NT dot_general so no explicit transpose of the input tile is needed.
    x = x_ref[...].astype(act)
    z = jax.lax.dot_general(
        w1_ref[...], x,
        dimension_numbers=(((1,), (1,)), ((), ())),
        preferred_element_type=f32)
    h = swish(z.astype(act) + bias[:, 0:1])

    # fc2..fc5: (H, H) @ (H, TILE_B), f32 MXU accumulation, `act` activations.
    for j in range(4):
        z = jnp.dot(wh_ref[j], h, preferred_element_type=f32)
        h = swish(z.astype(act) + bias[:, j + 1:j + 2])

    # fc6 (H -> 1): VPU multiply + sublane (XLU) reduction in f32
    # (skip the <1%-fill MXU matmul).
    out = jnp.sum(w6_ref[...].astype(f32) * h.astype(f32), axis=0, keepdims=True)
    o_ref[...] = (out + b_ref[0:1, 5:6]).astype(o_ref.dtype)   # (1, TILE_B)


# ------------------------------ host wrapper ---------------------------------

def pack_params(params, use_bf16=False):
    """params: [(W, b)] * 6 with W in torch (out, in) layout, b shape (out,)."""
    (W1, b1), (W2, b2), (W3, b3), (W4, b4), (W5, b5), (W6, b6) = params
    H = W1.shape[0]

    w1 = jnp.asarray(W1, jnp.float32)                       # (H, S)
    wh = jnp.stack([W2, W3, W4, W5], axis=0).astype(jnp.float32)   # (4, H, H)
    w6 = jnp.asarray(W6, jnp.float32).T                     # (H, 1) column

    b6_col = jnp.zeros((H,), jnp.float32).at[0].set(jnp.asarray(b6, jnp.float32)[0])
    b_slab = jnp.stack(
        [jnp.asarray(c, jnp.float32) for c in (b1, b2, b3, b4, b5)] + [b6_col],
        axis=1)                                             # (H, 6)

    if use_bf16:
        # bf16 MXU weights (also the activation dtype inside the kernel).
        w1 = w1.astype(jnp.bfloat16)
        wh = wh.astype(jnp.bfloat16)
    return w1, wh, w6, b_slab


def _choose_tile_b(B, tile_b):
    # Lane-aligned tile, capped for v7x's 64 MiB VMEM; guarantee >= 2 grid
    # steps when the batch is big enough so both v7x TensorCores get work.
    tile_b = max(128, (min(tile_b, 1 << 15) // 128) * 128)
    if B > 128:
        half = ((((B + 1) // 2) + 127) // 128) * 128
        tile_b = min(tile_b, half)
    else:
        tile_b = 128
    return tile_b


def critic_forward(state, params, *, tile_b=2048, use_bf16=False):
    """state: [B, state_size] f32.  Returns [B, 1] f32 value estimates."""
    B, S = state.shape
    H = params[0][0].shape[0]
    w1, wh, w6, b_slab = pack_params(params, use_bf16=use_bf16)

    tile_b = _choose_tile_b(B, tile_b)
    grid = (pl.cdiv(B, tile_b),)
    out_cols = grid[0] * tile_b

    resident = dict(pipeline_mode=pl.Buffered(1))   # constant blocks: 1 buffer

    out = pl.pallas_call(
        critic_kernel,
        out_shape=jax.ShapeDtypeStruct((1, out_cols), jnp.float32),
        grid_spec=pltpu.PrefetchScalarGridSpec(
            num_scalar_prefetch=0,
            grid=grid,
            in_specs=[
                # state in natural (B, S) layout, tiled over batch; the final
                # partial tile may contain garbage rows past B -- their output
                # lanes are discarded below.  Do NOT add cross-batch
                # reductions inside the kernel.
                pl.BlockSpec((tile_b, S), lambda i: (i, 0)),
                # weights / biases: full-array blocks, constant index_map.
                pl.BlockSpec((H, S), lambda i: (0, 0), **resident),
                pl.BlockSpec((4, H, H), lambda i: (0, 0, 0), **resident),
                pl.BlockSpec((H, 1), lambda i: (0, 0), **resident),
                pl.BlockSpec((H, 6), lambda i: (0, 0), **resident),
            ],
            out_specs=pl.BlockSpec((1, tile_b), lambda i: (0, i)),
        ),
        compiler_params=pltpu.CompilerParams(
            dimension_semantics=(pltpu.PARALLEL,),   # shard batch tiles (v7x)
            vmem_limit_bytes=32 * 1024 * 1024,
        ),
    )(state, w1, wh, w6, b_slab)

    return out[0, :B].reshape(B, 1)


# ------------------------- deterministic parameter init ---------------------

def orthogonal_init(key, rows, cols, gain=1.0):
    """Orthogonal (rows, cols) matrix matching torch.nn.init.orthogonal_."""
    big, small = max(rows, cols), min(rows, cols)
    a = jax.random.normal(key, (big, small), dtype=jnp.float32)
    q, r = jnp.linalg.qr(a)
    d = jnp.diagonal(r)
    q = q * jnp.where(d == 0, 1.0, jnp.sign(d))
    if rows < cols:
        q = q.T
    return (gain * q[:rows, :cols]).astype(jnp.float32)


def make_params(key, state_size, hidden_size):
    dims = [(state_size, hidden_size)] + [(hidden_size, hidden_size)] * 4 + [(hidden_size, 1)]
    params = []
    for i, (din, dout) in enumerate(dims):
        k = jax.random.fold_in(key, i)
        w = orthogonal_init(k, dout, din)              # torch (out, in) layout
        b = jnp.zeros((dout,), dtype=jnp.float32)      # constant_(bias, 0)
        params.append((w, b))
    return params


def randomize_biases(key, params, scale=0.1):
    out = []
    for i, (w, b) in enumerate(params):
        kb = jax.random.fold_in(key, 100 + i)
        out.append((w, scale * jax.random.normal(kb, b.shape, jnp.float32)))
    return out


# ----------------------------- pure-JAX reference ----------------------------

def reference_forward(state, params):
    hp = jax.lax.Precision.HIGHEST
    h = state
    for (w, b) in params[:-1]:
        z = jnp.dot(h, w.T, precision=hp) + b
        h = z * jax.nn.sigmoid(z)
    w, b = params[-1]
    return jnp.dot(h, w.T, precision=hp) + b


# ----------------------------------- main ------------------------------------

if __name__ == "__main__":
    key = jax.random.PRNGKey(0)
    batch, state_size, hidden_size = 200, 16, 32   # non-multiple-of-tile batch

    k_x, k_p, k_b = jax.random.split(key, 3)
    state = jax.random.normal(k_x, (batch, state_size), dtype=jnp.float32)

    # 1) module-matching params (orthogonal weights, zero bias), f32 path.
    #    tile_b auto-clamps to 128 -> 2-step grid with a partial last tile.
    params = make_params(k_p, state_size, hidden_size)
    out = jax.block_until_ready(critic_forward(state, params))
    ref = reference_forward(state, params)
    assert out.shape == (batch, 1), out.shape
    assert jnp.allclose(out, ref, atol=2e-3, rtol=2e-3), float(jnp.max(jnp.abs(out - ref)))

    # 2) non-zero biases (exercises the packed-bias path).
    params_b = randomize_biases(k_b, params)
    out_b = jax.block_until_ready(critic_forward(state, params_b))
    ref_b = reference_forward(state, params_b)
    assert jnp.allclose(out_b, ref_b, atol=2e-3, rtol=2e-3), \
        float(jnp.max(jnp.abs(out_b - ref_b)))

    # 3) bf16 fast path (bf16 weights + activations, f32 accumulation/output);
    #    error compounds over 5 layers -> looser tolerance.
    out_bf = jax.block_until_ready(critic_forward(state, params_b, use_bf16=True))
    assert jnp.allclose(out_bf, ref_b, atol=5e-2, rtol=5e-2), \
        float(jnp.max(jnp.abs(out_bf - ref_b)))

    print("KERNEL_OK")
</pallas_src>

<mosaic_0001>
module attributes {stable_mosaic.version = 11 : i64} {
  func.func @critic_kernel(%arg0: i32, %arg1: memref<128x16xf32, #tpu.memory_space<vmem>>, %arg2: memref<32x16xf32, #tpu.memory_space<vmem>>, %arg3: memref<4x32x32xf32, #tpu.memory_space<vmem>>, %arg4: memref<32x1xf32, #tpu.memory_space<vmem>>, %arg5: memref<32x6xf32, #tpu.memory_space<vmem>>, %arg6: memref<1x128xf32, #tpu.memory_space<vmem>>) attributes {dimension_semantics = [#tpu.dimension_semantics<parallel>], iteration_bounds = array<i64: 2>, scalar_prefetch = 0 : i64, scratch_operands = 0 : i64, tpu.core_type = #tpu.core_type<tc>, window_params = [{transform_indices = @transform_0, window_bounds = array<i64: 128, 16>}, {pipeline_mode = #tpu.pipeline_mode<synchronous>, transform_indices = @transform_1, window_bounds = array<i64: 32, 16>}, {pipeline_mode = #tpu.pipeline_mode<synchronous>, transform_indices = @transform_2, window_bounds = array<i64: 4, 32, 32>}, {pipeline_mode = #tpu.pipeline_mode<synchronous>, transform_indices = @transform_3, window_bounds = array<i64: 32, 1>}, {pipeline_mode = #tpu.pipeline_mode<synchronous>, transform_indices = @transform_4, window_bounds = array<i64: 32, 6>}, {transform_indices = @transform_5, window_bounds = array<i64: 1, 128>}]} {
    %c0 = arith.constant 0 : index
    %c0_0 = arith.constant 0 : index
    %0 = vector.load %arg5[%c0, %c0_0] : memref<32x6xf32, #tpu.memory_space<vmem>>, vector<32x6xf32>
    %c0_1 = arith.constant 0 : index
    %c0_2 = arith.constant 0 : index
    %1 = vector.load %arg1[%c0_1, %c0_2] : memref<128x16xf32, #tpu.memory_space<vmem>>, vector<128x16xf32>
    %c0_3 = arith.constant 0 : index
    %c0_4 = arith.constant 0 : index
    %2 = vector.load %arg2[%c0_3, %c0_4] : memref<32x16xf32, #tpu.memory_space<vmem>>, vector<32x16xf32>
    %cst = arith.constant dense<0.000000e+00> : vector<32x128xf32>
    %3 = tpu.matmul %2, %1, %cst {dimension_numbers = #tpu.dot_dimension_numbers<[1], [1], [0], [0], [0, 0, 1, 0], [], []>} : vector<32x16xf32>, vector<128x16xf32>, vector<32x128xf32> -> vector<32x128xf32>
    %4 = vector.extract_strided_slice %0 {offsets = [0, 0], sizes = [32, 1], strides = [1, 1]} : vector<32x6xf32> to vector<32x1xf32>
    %5 = vector.broadcast %4 : vector<32x1xf32> to vector<32x128xf32>
    %6 = arith.addf %3, %5 : vector<32x128xf32>
    %cst_5 = arith.constant 5.000000e-01 : f32
    %7 = vector.broadcast %cst_5 : f32 to vector<32x128xf32>
    %8 = arith.mulf %7, %6 : vector<32x128xf32>
    %cst_6 = arith.constant 5.000000e-01 : f32
    %9 = vector.broadcast %cst_6 : f32 to vector<32x128xf32>
    %10 = arith.mulf %9, %6 : vector<32x128xf32>
    %11 = math.tanh %10 : vector<32x128xf32>
    %cst_7 = arith.constant 1.000000e+00 : f32
    %12 = vector.broadcast %cst_7 : f32 to vector<32x128xf32>
    %13 = arith.addf %12, %11 : vector<32x128xf32>
    %14 = arith.mulf %8, %13 : vector<32x128xf32>
    %c0_8 = arith.constant 0 : index
    %c0_9 = arith.constant 0 : index
    %c0_10 = arith.constant 0 : index
    %15 = vector.load %arg3[%c0_8, %c0_9, %c0_10] : memref<4x32x32xf32, #tpu.memory_space<vmem>>, vector<1x32x32xf32>
    %16 = vector.shape_cast %15 : vector<1x32x32xf32> to vector<32x32xf32>
    %cst_11 = arith.constant dense<0.000000e+00> : vector<32x128xf32>
    %17 = tpu.matmul %16, %14, %cst_11 {dimension_numbers = #tpu.dot_dimension_numbers<[1], [0], [0], [1], [0, 0, 1, 1], [], []>} : vector<32x32xf32>, vector<32x128xf32>, vector<32x128xf32> -> vector<32x128xf32>
    %18 = vector.extract_strided_slice %0 {offsets = [0, 1], sizes = [32, 1], strides = [1, 1]} : vector<32x6xf32> to vector<32x1xf32>
    %19 = vector.broadcast %18 : vector<32x1xf32> to vector<32x128xf32>
    %20 = arith.addf %17, %19 : vector<32x128xf32>
    %cst_12 = arith.constant 5.000000e-01 : f32
    %21 = vector.broadcast %cst_12 : f32 to vector<32x128xf32>
    %22 = arith.mulf %21, %20 : vector<32x128xf32>
    %cst_13 = arith.constant 5.000000e-01 : f32
    %23 = vector.broadcast %cst_13 : f32 to vector<32x128xf32>
    %24 = arith.mulf %23, %20 : vector<32x128xf32>
    %25 = math.tanh %24 : vector<32x128xf32>
    %cst_14 = arith.constant 1.000000e+00 : f32
    %26 = vector.broadcast %cst_14 : f32 to vector<32x128xf32>
    %27 = arith.addf %26, %25 : vector<32x128xf32>
    %28 = arith.mulf %22, %27 : vector<32x128xf32>
    %c1 = arith.constant 1 : index
    %c0_15 = arith.constant 0 : index
    %c0_16 = arith.constant 0 : index
    %29 = vector.load %arg3[%c1, %c0_15, %c0_16] : memref<4x32x32xf32, #tpu.memory_space<vmem>>, vector<1x32x32xf32>
    %30 = vector.shape_cast %29 : vector<1x32x32xf32> to vector<32x32xf32>
    %cst_17 = arith.constant dense<0.000000e+00> : vector<32x128xf32>
    %31 = tpu.matmul %30, %28, %cst_17 {dimension_numbers = #tpu.dot_dimension_numbers<[1], [0], [0], [1], [0, 0, 1, 1], [], []>} : vector<32x32xf32>, vector<32x128xf32>, vector<32x128xf32> -> vector<32x128xf32>
    %32 = vector.extract_strided_slice %0 {offsets = [0, 2], sizes = [32, 1], strides = [1, 1]} : vector<32x6xf32> to vector<32x1xf32>
    %33 = vector.broadcast %32 : vector<32x1xf32> to vector<32x128xf32>
    %34 = arith.addf %31, %33 : vector<32x128xf32>
    %cst_18 = arith.constant 5.000000e-01 : f32
    %35 = vector.broadcast %cst_18 : f32 to vector<32x128xf32>
    %36 = arith.mulf %35, %34 : vector<32x128xf32>
    %cst_19 = arith.constant 5.000000e-01 : f32
    %37 = vector.broadcast %cst_19 : f32 to vector<32x128xf32>
    %38 = arith.mulf %37, %34 : vector<32x128xf32>
    %39 = math.tanh %38 : vector<32x128xf32>
    %cst_20 = arith.constant 1.000000e+00 : f32
    %40 = vector.broadcast %cst_20 : f32 to vector<32x128xf32>
    %41 = arith.addf %40, %39 : vector<32x128xf32>
    %42 = arith.mulf %36, %41 : vector<32x128xf32>
    %c2 = arith.constant 2 : index
    %c0_21 = arith.constant 0 : index
    %c0_22 = arith.constant 0 : index
    %43 = vector.load %arg3[%c2, %c0_21, %c0_22] : memref<4x32x32xf32, #tpu.memory_space<vmem>>, vector<1x32x32xf32>
    %44 = vector.shape_cast %43 : vector<1x32x32xf32> to vector<32x32xf32>
    %cst_23 = arith.constant dense<0.000000e+00> : vector<32x128xf32>
    %45 = tpu.matmul %44, %42, %cst_23 {dimension_numbers = #tpu.dot_dimension_numbers<[1], [0], [0], [1], [0, 0, 1, 1], [], []>} : vector<32x32xf32>, vector<32x128xf32>, vector<32x128xf32> -> vector<32x128xf32>
    %46 = vector.extract_strided_slice %0 {offsets = [0, 3], sizes = [32, 1], strides = [1, 1]} : vector<32x6xf32> to vector<32x1xf32>
    %47 = vector.broadcast %46 : vector<32x1xf32> to vector<32x128xf32>
    %48 = arith.addf %45, %47 : vector<32x128xf32>
    %cst_24 = arith.constant 5.000000e-01 : f32
    %49 = vector.broadcast %cst_24 : f32 to vector<32x128xf32>
    %50 = arith.mulf %49, %48 : vector<32x128xf32>
    %cst_25 = arith.constant 5.000000e-01 : f32
    %51 = vector.broadcast %cst_25 : f32 to vector<32x128xf32>
    %52 = arith.mulf %51, %48 : vector<32x128xf32>
    %53 = math.tanh %52 : vector<32x128xf32>
    %cst_26 = arith.constant 1.000000e+00 : f32
    %54 = vector.broadcast %cst_26 : f32 to vector<32x128xf32>
    %55 = arith.addf %54, %53 : vector<32x128xf32>
    %56 = arith.mulf %50, %55 : vector<32x128xf32>
    %c3 = arith.constant 3 : index
    %c0_27 = arith.constant 0 : index
    %c0_28 = arith.constant 0 : index
    %57 = vector.load %arg3[%c3, %c0_27, %c0_28] : memref<4x32x32xf32, #tpu.memory_space<vmem>>, vector<1x32x32xf32>
    %58 = vector.shape_cast %57 : vector<1x32x32xf32> to vector<32x32xf32>
    %cst_29 = arith.constant dense<0.000000e+00> : vector<32x128xf32>
    %59 = tpu.matmul %58, %56, %cst_29 {dimension_numbers = #tpu.dot_dimension_numbers<[1], [0], [0], [1], [0, 0, 1, 1], [], []>} : vector<32x32xf32>, vector<32x128xf32>, vector<32x128xf32> -> vector<32x128xf32>
    %60 = vector.extract_strided_slice %0 {offsets = [0, 4], sizes = [32, 1], strides = [1, 1]} : vector<32x6xf32> to vector<32x1xf32>
    %61 = vector.broadcast %60 : vector<32x1xf32> to vector<32x128xf32>
    %62 = arith.addf %59, %61 : vector<32x128xf32>
    %cst_30 = arith.constant 5.000000e-01 : f32
    %63 = vector.broadcast %cst_30 : f32 to vector<32x128xf32>
    %64 = arith.mulf %63, %62 : vector<32x128xf32>
    %cst_31 = arith.constant 5.000000e-01 : f32
    %65 = vector.broadcast %cst_31 : f32 to vector<32x128xf32>
    %66 = arith.mulf %65, %62 : vector<32x128xf32>
    %67 = math.tanh %66 : vector<32x128xf32>
    %cst_32 = arith.constant 1.000000e+00 : f32
    %68 = vector.broadcast %cst_32 : f32 to vector<32x128xf32>
    %69 = arith.addf %68, %67 : vector<32x128xf32>
    %70 = arith.mulf %64, %69 : vector<32x128xf32>
    %c0_33 = arith.constant 0 : index
    %c0_34 = arith.constant 0 : index
    %71 = vector.load %arg4[%c0_33, %c0_34] : memref<32x1xf32, #tpu.memory_space<vmem>>, vector<32x1xf32>
    %72 = vector.broadcast %71 : vector<32x1xf32> to vector<32x128xf32>
    %73 = arith.mulf %72, %70 : vector<32x128xf32>
    %cst_35 = arith.constant dense<0.000000e+00> : vector<128xf32>
    %74 = vector.multi_reduction <add>, %73, %cst_35 [0] : vector<32x128xf32> to vector<128xf32>
    %75 = vector.shape_cast %74 : vector<128xf32> to vector<1x128xf32>
    %c0_36 = arith.constant 0 : index
    %c5 = arith.constant 5 : index
    %76 = vector.load %arg5[%c0_36, %c5] : memref<32x6xf32, #tpu.memory_space<vmem>>, vector<1x1xf32>
    %77 = vector.broadcast %76 : vector<1x1xf32> to vector<1x128xf32>
    %78 = arith.addf %75, %77 : vector<1x128xf32>
    %c0_37 = arith.constant 0 : index
    %c0_38 = arith.constant 0 : index
    %79 = vector.load %arg6[%c0_37, %c0_38] : memref<1x128xf32, #tpu.memory_space<vmem>>, vector<1x128xf32>
    tpu.vector_store %arg6[%c0_37, %c0_38], %78 {strides = array<i32>} : memref<1x128xf32, #tpu.memory_space<vmem>>, vector<1x128xf32>,
    return
  }
  func.func @transform_0(%arg0: i32) -> (i32, i32) {
    %c0_i32 = arith.constant 0 : i32
    %c0_i32_0 = arith.constant 0 : i32
    return %arg0, %c0_i32 : i32, i32
  }
  func.func @transform_1(%arg0: i32) -> (i32, i32) {
    %c0_i32 = arith.constant 0 : i32
    %c0_i32_0 = arith.constant 0 : i32
    %c0_i32_1 = arith.constant 0 : i32
    return %c0_i32, %c0_i32_0 : i32, i32
  }
  func.func @transform_2(%arg0: i32) -> (i32, i32, i32) {
    %c0_i32 = arith.constant 0 : i32
    %c0_i32_0 = arith.constant 0 : i32
    %c0_i32_1 = arith.constant 0 : i32
    %c0_i32_2 = arith.constant 0 : i32
    return %c0_i32, %c0_i32_0, %c0_i32_1 : i32, i32, i32
  }
  func.func @transform_3(%arg0: i32) -> (i32, i32) {
    %c0_i32 = arith.constant 0 : i32
    %c0_i32_0 = arith.constant 0 : i32
    %c0_i32_1 = arith.constant 0 : i32
    return %c0_i32, %c0_i32_0 : i32, i32
  }
  func.func @transform_4(%arg0: i32) -> (i32, i32) {
    %c0_i32 = arith.constant 0 : i32
    %c0_i32_0 = arith.constant 0 : i32
    %c0_i32_1 = arith.constant 0 : i32
    return %c0_i32, %c0_i32_0 : i32, i32
  }
  func.func @transform_5(%arg0: i32) -> (i32, i32) {
    %c0_i32 = arith.constant 0 : i32
    %c0_i32_0 = arith.constant 0 : i32
    return %c0_i32, %arg0 : i32, i32
  }
}

</mosaic_0001>

<llo_original>
// kernel: tpu_custom_call.1
$region0: #{tpu_custom_call.1}
  #allocation0 [shape = 'u32[]', space=smem, size = 0x4, offset = 0x4, fixed_abs, tag = 'smem constant byte address 0x4 - core index']
  #allocation1 [shape = 'u32[144,128]{1,0:T(1,128)}', space=vmem, size = 0x12000, scoped, tag = 'internal scratch']
  %s0 = inlined_call_operand.vmem [shape: f32[200,16], index: 0, kind: input, shape index: {}]
  %s1 = inlined_call_operand.vmem [shape: f32[32,16], index: 1, kind: input, shape index: {}]
  %s2 = inlined_call_operand.vmem [shape: f32[4,32,32], index: 2, kind: input, shape index: {}]
  %s3 = inlined_call_operand.vmem [shape: f32[32,1], index: 3, kind: input, shape index: {}]
  %s4 = inlined_call_operand.vmem [shape: f32[32,6], index: 4, kind: input, shape index: {}]
  %s5 = inlined_call_operand.hbm [shape: f32[1,256], index: 5, kind: output, shape index: {}]
  %s6 = sld [smem:[#allocation0]]
  $region53: #{tpu_custom_call.1} parent=0
    _
  %s8 = ssub.s32 1, %s6
  %s9 = scalar_select 0, %s8, %s6
  $region1: #{tpu_custom_call.1} parent=0
    #allocation2 [shape = 'u8[1024]{0}', space=vmem, size = 0x400, scoped, tag = 'output window, operand 0']
    #allocation3 [shape = 's32[2]{0}', space=sflag, size = 0x8, scoped, tag = 'scoped memory for tpu_custom_call.1']
    %10 = vsyncpa [#allocation3], 0
    %s11 = scalar_lea.sflag [#allocation3], 1
    %12 = vsyncpa %s11, 0
    loop: start=0, step=1, limit=4
    $region2: #{tpu_custom_call.1} parent=1 // loop_pre_header
      _
    $region3: #{tpu_custom_call.1} parent=1 // loop_header
      %s14 = sphi 0, %s18
      %p15 = scmp.ge.s32.totalorder %s14, 4
      %s24 = sphi 0, %s26
      %s27 = sphi 0, %s24
      %s28 = sphi 0, %s27
      %s44 = sphi 0, %s28
      %s48 = sphi 0, %s48
      %s50 = sphi 0, %s48
      %s51 = sphi 0, %s50
      %s65 = sphi 0, %s51
      %s69 = sphi 0, %s69
      %s71 = sphi 0, %s69
      %s72 = sphi 0, %s71
      %s86 = sphi 0, %s72
      %s90 = sphi 0, %s90
      %s92 = sphi 0, %s90
      %s93 = sphi 0, %s92
      %s107 = sphi 0, %s93
      %s111 = sphi 0, %s111
      %s113 = sphi 0, %s111
      %s114 = sphi 0, %s113
      %s128 = sphi 0, %s114
      %s134 = sphi 0, %s136
      %s137 = sphi 0, %s134
      %s138 = sphi 0, %s137
      %s154 = sphi 0, %s138
    $region4: #{tpu_custom_call.1} parent=1 // loop_header_branch
      %17 = sbr.rel (%p15) target = $region8
    $region5: #{tpu_custom_call.1} parent=1 // loop_body
      %s19 = ssub.s32 %s14, 1
      %s20 = ssub.s32 %s14, 2
      %s21 = sadd.s32 %s14, 1
      %s22 = ssub.s32 %s14, %s21
      %p23 = scmp.eq.s32.totalorder %s22, 0
      %s25 = sadd.s32 %s24, 1
      %s26 = scalar_select %p23, %s24, %s25
      %p29 = pneg %p23
      %p30 = scmp.eq.s32.totalorder %s14, 1
      %p31 = por %p29, %p30
      %p32 = scmp.ne.s32.totalorder %s24, %s27
      %p33 = scmp.eq.s32.totalorder %s14, 0
      %p34 = por %p32, %p33
      %p35 = scmp.ne.s32.totalorder %s24, %s27
      %p36 = scmp.eq.s32.totalorder %s19, 1
      %p37 = por %p35, %p36
      %p38 = scmp.ne.s32.totalorder %s27, %s28
      %p39 = scmp.eq.s32.totalorder %s19, 0
      %p40 = por %p38, %p39
      %p41 = scmp.ne.s32.totalorder %s27, %s28
      %p42 = scmp.eq.s32.totalorder %s20, 1
      %p43 = por %p41, %p42
      %p45 = scmp.ne.s32.totalorder %s28, %s44
      %p46 = scmp.eq.s32.totalorder %s20, 0
      %p47 = por %p45, %p46
      %s49 = sadd.s32 %s48, 1
      %p52 = scmp.eq.s32.totalorder %s14, 1
      %p53 = scmp.ne.s32.totalorder %s48, %s50
      %p54 = scmp.eq.s32.totalorder %s14, 0
      %p55 = por %p53, %p54
      %p56 = scmp.ne.s32.totalorder %s48, %s50
      %p57 = scmp.eq.s32.totalorder %s19, 1
      %p58 = por %p56, %p57
      %p59 = scmp.ne.s32.totalorder %s50, %s51
      %p60 = scmp.eq.s32.totalorder %s19, 0
      %p61 = por %p59, %p60
      %p62 = scmp.ne.s32.totalorder %s50, %s51
      %p63 = scmp.eq.s32.totalorder %s20, 1
      %p64 = por %p62, %p63
      %p66 = scmp.ne.s32.totalorder %s51, %s65
      %p67 = scmp.eq.s32.totalorder %s20, 0
      %p68 = por %p66, %p67
      %s70 = sadd.s32 %s69, 1
      %p73 = scmp.eq.s32.totalorder %s14, 1
      %p74 = scmp.ne.s32.totalorder %s69, %s71
      %p75 = scmp.eq.s32.totalorder %s14, 0
      %p76 = por %p74, %p75
      %p77 = scmp.ne.s32.totalorder %s69, %s71
      %p78 = scmp.eq.s32.totalorder %s19, 1
      %p79 = por %p77, %p78
      %p80 = scmp.ne.s32.totalorder %s71, %s72
      %p81 = scmp.eq.s32.totalorder %s19, 0
      %p82 = por %p80, %p81
      %p83 = scmp.ne.s32.totalorder %s71, %s72
      %p84 = scmp.eq.s32.totalorder %s20, 1
      %p85 = por %p83, %p84
      %p87 = scmp.ne.s32.totalorder %s72, %s86
      %p88 = scmp.eq.s32.totalorder %s20, 0
      %p89 = por %p87, %p88
      %s91 = sadd.s32 %s90, 1
      %p94 = scmp.eq.s32.totalorder %s14, 1
      %p95 = scmp.ne.s32.totalorder %s90, %s92
      %p96 = scmp.eq.s32.totalorder %s14, 0
      %p97 = por %p95, %p96
      %p98 = scmp.ne.s32.totalorder %s90, %s92
      %p99 = scmp.eq.s32.totalorder %s19, 1
      %p100 = por %p98, %p99
      %p101 = scmp.ne.s32.totalorder %s92, %s93
      %p102 = scmp.eq.s32.totalorder %s19, 0
      %p103 = por %p101, %p102
      %p104 = scmp.ne.s32.totalorder %s92, %s93
      %p105 = scmp.eq.s32.totalorder %s20, 1
      %p106 = por %p104, %p105
      %p108 = scmp.ne.s32.totalorder %s93, %s107
      %p109 = scmp.eq.s32.totalorder %s20, 0
      %p110 = por %p108, %p109
      %s112 = sadd.s32 %s111, 1
      %p115 = scmp.eq.s32.totalorder %s14, 1
      %p116 = scmp.ne.s32.totalorder %s111, %s113
      %p117 = scmp.eq.s32.totalorder %s14, 0
      %p118 = por %p116, %p117
      %p119 = scmp.ne.s32.totalorder %s111, %s113
      %p120 = scmp.eq.s32.totalorder %s19, 1
      %p121 = por %p119, %p120
      %p122 = scmp.ne.s32.totalorder %s113, %s114
      %p123 = scmp.eq.s32.totalorder %s19, 0
      %p124 = por %p122, %p123
      %p125 = scmp.ne.s32.totalorder %s113, %s114
      %p126 = scmp.eq.s32.totalorder %s20, 1
      %p127 = por %p125, %p126
      %p129 = scmp.ne.s32.totalorder %s114, %s128
      %p130 = scmp.eq.s32.totalorder %s20, 0
      %p131 = por %p129, %p130
      %s132 = ssub.s32 %s14, %s21
      %p133 = scmp.eq.s32.totalorder %s132, 0
      %s135 = sadd.s32 %s134, 1
      %s136 = scalar_select %p133, %s134, %s135
      %p139 = pneg %p133
      %p140 = scmp.eq.s32.totalorder %s14, 1
      %p141 = por %p139, %p140
      %p142 = scmp.ne.s32.totalorder %s134, %s137
      %p143 = scmp.eq.s32.totalorder %s14, 0
      %p144 = por %p142, %p143
      %p145 = scmp.ne.s32.totalorder %s134, %s137
      %p146 = scmp.eq.s32.totalorder %s19, 1
      %p147 = por %p145, %p146
      %p148 = scmp.ne.s32.totalorder %s137, %s138
      %p149 = scmp.eq.s32.totalorder %s19, 0
      %p150 = por %p148, %p149
      %p151 = scmp.ne.s32.totalorder %s137, %s138
      %p152 = scmp.eq.s32.totalorder %s20, 1
      %p153 = por %p151, %p152
      %p155 = scmp.ne.s32.totalorder %s138, %s154
      %p156 = scmp.eq.s32.totalorder %s20, 0
      %p157 = por %p155, %p156
      %p158 = scmp.le.s32.totalorder 1, %s14
      %p159 = scmp.lt.s32.totalorder %s14, 3
      %p160 = pnand %p158, %p159
      %p161 = pneg %p160
      // Predicated region
      $region9: #{tpu_custom_call.1} parent=5 // pred_check
        _
      $region10: #{tpu_custom_call.1} parent=5 // pred_check_branch
        %163 = sbr.rel (%p160) target = $region12
      $region11: #{tpu_custom_call.1} parent=5 // pred_region
        %s164 = ssub.s32 %s14, 1
        // Predicated region
        $region13: #{tpu_custom_call.1} parent=11 // pred_check
          %p165 = pneg %p61
        $region14: #{tpu_custom_call.1} parent=11 // pred_check_branch
          %167 = sbr.rel (%p165) target = $region16
        $region15: #{tpu_custom_call.1} parent=11 // pred_region
          _
        $region16: #{tpu_custom_call.1} parent=11 // pred_fallthru
          _
        // Predicated region
        $region17: #{tpu_custom_call.1} parent=11 // pred_check
          %p168 = pneg %p82
        $region18: #{tpu_custom_call.1} parent=11 // pred_check_branch
          %170 = sbr.rel (%p168) target = $region20
        $region19: #{tpu_custom_call.1} parent=11 // pred_region
          _
        $region20: #{tpu_custom_call.1} parent=11 // pred_fallthru
          _
        // Predicated region
        $region21: #{tpu_custom_call.1} parent=11 // pred_check
          %p171 = pneg %p103
        $region22: #{tpu_custom_call.1} parent=11 // pred_check_branch
          %173 = sbr.rel (%p171) target = $region24
        $region23: #{tpu_custom_call.1} parent=11 // pred_region
          _
        $region24: #{tpu_custom_call.1} parent=11 // pred_fallthru
          _
        // Predicated region
        $region25: #{tpu_custom_call.1} parent=11 // pred_check
          %p174 = pneg %p124
        $region26: #{tpu_custom_call.1} parent=11 // pred_check_branch
          %176 = sbr.rel (%p174) target = $region28
        $region27: #{tpu_custom_call.1} parent=11 // pred_region
          _
        $region28: #{tpu_custom_call.1} parent=11 // pred_fallthru
          _
      $region12: #{tpu_custom_call.1} parent=5 // pred_fallthru
        _
      %p177 = scmp.lt.s32.totalorder %s14, 2
      // Predicated region
      $region29: #{tpu_custom_call.1} parent=5 // pred_check
        %p178 = pneg %p177
      $region30: #{tpu_custom_call.1} parent=5 // pred_check_branch
        %180 = sbr.rel (%p178) target = $region32
      $region31: #{tpu_custom_call.1} parent=5 // pred_region
        // Predicated region
        $region33: #{tpu_custom_call.1} parent=31 // pred_check
          %p181 = pneg %p34
        $region34: #{tpu_custom_call.1} parent=31 // pred_check_branch
          %183 = sbr.rel (%p181) target = $region36
        $region35: #{tpu_custom_call.1} parent=31 // pred_region
          %s184 = smul.u32 16, %s14
          %s185 = ssub.s32 25, %s184
          %p186 = scmp.lt.s32.totalorder %s185, 16
          %s187 = scalar_select %p186, %s185, 16
          %s188 = smul.u32 128, %s187
          %p189 = scmp.lt.s32.totalorder %s184, 24
          %s190 = scalar_select %p189, %s184, 24
          %s191 = smul.addr %s190, 8
          %s192 = scalar_lea.vmem %s0, %s191
          %s193 = smul.u32 16, %s14
          %s194 = ssub.s32 25, %s193
          %p195 = scmp.lt.s32.totalorder %s194, 16
          %s196 = scalar_select %p195, %s194, 16
          %s197 = smul.u32 128, %s196
        $region36: #{tpu_custom_call.1} parent=31 // pred_fallthru
          _
      $region32: #{tpu_custom_call.1} parent=5 // pred_fallthru
        _
      %p198 = scmp.le.s32.totalorder 1, %s14
      %p199 = scmp.lt.s32.totalorder %s14, 3
      %p200 = pnand %p198, %p199
      %p201 = pneg %p200
      // Predicated region
      $region37: #{tpu_custom_call.1} parent=5 // pred_check
        _
      $region38: #{tpu_custom_call.1} parent=5 // pred_check_branch
        %203 = sbr.rel (%p200) target = $region40
      $region39: #{tpu_custom_call.1} parent=5 // pred_region
        %s204 = ssub.s32 %s14, 1
        %s205 = smul.u32 16, %s19
        %s206 = ssub.s32 25, %s205
        %p207 = scmp.lt.s32.totalorder %s206, 16
        %s208 = scalar_select %p207, %s206, 16
        %s209 = smul.u32 128, %s208
        %p210 = scmp.lt.s32.totalorder %s205, 24
        %s211 = scalar_select %p210, %s205, 24
        %s212 = smul.addr %s211, 8
        %s213 = scalar_lea.vmem %s0, %s212
        %p214 = pneg %p40
        %p215 = pneg %p37
        %p216 = pneg %p61
        %p217 = pneg %p58
        %p218 = pneg %p82
        %p219 = pneg %p79
        %p220 = pneg %p103
        %p221 = pneg %p100
        %p222 = pneg %p124
        %p223 = pneg %p121
        %p224 = pneg %p150
        %p225 = pneg %p147
        %s226 = sand.u32 %s137, 1
        %s227 = scalar_lea.sflag [#allocation3], %s226
        %s228 = sand.u32 %s137, 1
        %s229 = scalar_lea.vmem [#allocation2], %s228
        %s230 = smul.u32 16, %s19
        %s231 = ssub.s32 25, %s230
        %p232 = scmp.lt.s32.totalorder %s231, 16
        %s233 = scalar_select %p232, %s231, 16
        %s234 = smul.u32 128, %s233
        %p235 = scmp.lt.s32.totalorder %s230, 24
        %s236 = scalar_select %p235, %s230, 24
        %s237 = smul.addr %s236, 8
        %s238 = scalar_lea.vmem %s0, %s237
        %s239 = smul.u32 16, %s19
        %s240 = ssub.s32 25, %s239
        %p241 = scmp.lt.s32.totalorder %s240, 16
        %s242 = scalar_select %p241, %s240, 16
        %s243 = smul.u32 128, %s242
        %v244 = vld [vmem:[%s4] sm:$0xff]
        %v245 = vld [vmem:[%s4 + $0x8] sm:$0xff]
        %v246 = vld [vmem:[%s4 + $0x10] sm:$0xff]
        %v247 = vld [vmem:[%s4 + $0x18] sm:$0xff]
        %v248 = vld [vmem:[%s238] sm:$0xff]
        %v249 = vld [vmem:[%s238 + $0x8] sm:$0xff]
        %v250 = vld [vmem:[%s238 + $0x10] sm:$0xff]
        %v251 = vld [vmem:[%s238 + $0x18] sm:$0xff]
        %v252 = vld [vmem:[%s238 + $0x20] sm:$0xff]
        %v253 = vld [vmem:[%s238 + $0x28] sm:$0xff]
        %v254 = vld [vmem:[%s238 + $0x30] sm:$0xff]
        %v255 = vld [vmem:[%s238 + $0x38] sm:$0xff]
        %v256 = vld [vmem:[%s238 + $0x40] sm:$0xff]
        %v257 = vld [vmem:[%s238 + $0x48] sm:$0xff]
        %v258 = vld [vmem:[%s238 + $0x50] sm:$0xff]
        %v259 = vld [vmem:[%s238 + $0x58] sm:$0xff]
        %v260 = vld [vmem:[%s238 + $0x60] sm:$0xff]
        %v261 = vld [vmem:[%s238 + $0x68] sm:$0xff]
        %v262 = vld [vmem:[%s238 + $0x70] sm:$0xff]
        %v263 = vld [vmem:[%s238 + $0x78] sm:$0xff]
        %v264 = vld [vmem:[%s1] sm:$0xff]
        %v265 = vld [vmem:[%s1 + $0x8] sm:$0xff]
        %v266 = vld [vmem:[%s1 + $0x10] sm:$0xff]
        %v267 = vld [vmem:[%s1 + $0x18] sm:$0xff]
        %269 = vset.pattern.permute.xlu0 0
        %270 = vperm.xlu0 %269, %v244
        %v271 = vpop.permute.xlu0 %270
        %274 = vset.pattern.permute.xlu0 0
        %275 = vperm.xlu0 %274, %v245
        %v276 = vpop.permute.xlu0 %275
        %279 = vset.pattern.permute.xlu0 0
        %280 = vperm.xlu0 %279, %v246
        %v281 = vpop.permute.xlu0 %280
        %284 = vset.pattern.permute.xlu0 0
        %285 = vperm.xlu0 %284, %v247
        %v286 = vpop.permute.xlu0 %285
        %vm288 = vcmask 130048
        %v290 = vsel %vm288, %v264, 0
        %v293 = vsel %vm288, %v265, 0
        %v296 = vsel %vm288, %v266, 0
        %v299 = vsel %vm288, %v267, 0
        %v302 = vsel %vm288, %v248, 0
        %v305 = vsel %vm288, %v249, 0
        %v308 = vsel %vm288, %v250, 0
        %v311 = vsel %vm288, %v251, 0
        %v314 = vsel %vm288, %v252, 0
        %v317 = vsel %vm288, %v253, 0
        %v320 = vsel %vm288, %v254, 0
        %v323 = vsel %vm288, %v255, 0
        %v326 = vsel %vm288, %v256, 0
        %v329 = vsel %vm288, %v257, 0
        %v332 = vsel %vm288, %v258, 0
        %v335 = vsel %vm288, %v259, 0
        %v338 = vsel %vm288, %v260, 0
        %v341 = vsel %vm288, %v261, 0
        %v344 = vsel %vm288, %v262, 0
        %v347 = vsel %vm288, %v263, 0
        %349 = vmatprep.subr.mxu0 0.0
        %350 = vmatpush1.xpose.msra.mxu0 %v347
        %351 = vmatprep.subr.mxu0 0.0
        %352 = vmatpush1.xpose.msra.mxu0 %v344
        %353 = vmatprep.subr.mxu0 0.0
        %354 = vmatpush1.xpose.msra.mxu0 %v341
        %355 = vmatprep.subr.mxu0 0.0
        %356 = vmatpush1.xpose.msra.mxu0 %v338
        %357 = vmatprep.subr.mxu0 0.0
        %358 = vmatpush1.xpose.msra.mxu0 %v335
        %359 = vmatprep.subr.mxu0 0.0
        %360 = vmatpush1.xpose.msra.mxu0 %v332
        %361 = vmatprep.subr.mxu0 0.0
        %362 = vmatpush1.xpose.msra.mxu0 %v329
        %363 = vmatprep.subr.mxu0 0.0
        %364 = vmatpush1.xpose.msra.mxu0 %v326
        %365 = vmatprep.subr.mxu0 0.0
        %366 = vmatpush1.xpose.msra.mxu0 %v323
        %367 = vmatprep.subr.mxu0 0.0
        %368 = vmatpush1.xpose.msra.mxu0 %v320
        %369 = vmatprep.subr.mxu0 0.0
        %370 = vmatpush1.xpose.msra.mxu0 %v317
        %371 = vmatprep.subr.mxu0 0.0
        %372 = vmatpush1.xpose.msra.mxu0 %v314
        %373 = vmatprep.subr.mxu0 0.0
        %374 = vmatpush1.xpose.msra.mxu0 %v311
        %375 = vmatprep.subr.mxu0 0.0
        %376 = vmatpush1.xpose.msra.mxu0 %v308
        %377 = vmatprep.subr.mxu0 0.0
        %378 = vmatpush1.xpose.msra.mxu0 %v305
        %379 = vmatprep.subr.mxu0 0.0
        %380 = vmatpush1.xpose.msra.mxu0 %v302
        %381 = vmatprep.subr.mxu0 0.0
        %382 = vmatpush2.xpose.msra.mxu0 0.0
        %383 = vmatprep.subr.mxu0 0.0
        %384 = vmatpush2.xpose.msra.mxu0 0.0
        %385 = vmatprep.subr.mxu0 0.0
        %386 = vmatpush2.xpose.msra.mxu0 0.0
        %387 = vmatprep.subr.mxu0 0.0
        %388 = vmatpush2.xpose.msra.mxu0 0.0
        %389 = vmatprep.subr.mxu0 0.0
        %390 = vmatpush2.xpose.msra.mxu0 0.0
        %391 = vmatprep.subr.mxu0 0.0
        %392 = vmatpush2.xpose.msra.mxu0 0.0
        %393 = vmatprep.subr.mxu0 0.0
        %394 = vmatpush2.xpose.msra.mxu0 0.0
        %395 = vmatprep.subr.mxu0 0.0
        %396 = vmatpush2.xpose.msra.mxu0 0.0
        %397 = vmatprep.subr.mxu0 0.0
        %398 = vmatpush2.xpose.msra.mxu0 0.0
        %399 = vmatprep.subr.mxu0 0.0
        %400 = vmatpush2.xpose.msra.mxu0 0.0
        %401 = vmatprep.subr.mxu0 0.0
        %402 = vmatpush2.xpose.msra.mxu0 0.0
        %403 = vmatprep.subr.mxu0 0.0
        %404 = vmatpush2.xpose.msra.mxu0 0.0
        %405 = vmatprep.subr.mxu0 0.0
        %406 = vmatpush2.xpose.msra.mxu0 0.0
        %407 = vmatprep.subr.mxu0 0.0
        %408 = vmatpush2.xpose.msra.mxu0 0.0
        %409 = vmatprep.subr.mxu0 0.0
        %410 = vmatpush2.xpose.msra.mxu0 0.0
        %411 = vmatprep.subr.mxu0 0.0
        %412 = vmatpush2.xpose.msra.mxu0 0.0
        %413 = vmatprep.mubr.f32.mxu0 0.0
        %414 = vmatmul.mubr.f32.gmra.mxu0 %v290
        %v415 = vpop.f32.mrf.mxu0
        %v416 = vadd.f32 %v271, %v415
        %v417 = vpop.f32.mrf.mxu0
        %418 = vmatprep.mubr.f32.mxu0 0.0
        %419 = vmatmul.mubr.f32.gmra.mxu0 %v293
        %v420 = vpop.f32.mrf.mxu0
        %v421 = vadd.f32 %v276, %v420
        %v422 = vpop.f32.mrf.mxu0
        %423 = vmatprep.mubr.f32.mxu0 0.0
        %424 = vmatmul.mubr.f32.gmra.mxu0 %v296
        %v425 = vpop.f32.mrf.mxu0
        %v426 = vadd.f32 %v281, %v425
        %v427 = vpop.f32.mrf.mxu0
        %428 = vmatprep.mubr.f32.mxu0 0.0
        %429 = vmatmul.mubr.f32.gmra.mxu0 %v299
        %v430 = vpop.f32.mrf.mxu0
        %v431 = vadd.f32 %v286, %v430
        %v432 = vpop.f32.mrf.mxu0
        %433 = vdwg.mxu0
        %v434 = vmul.f32 %v416, 0.5
        %v435 = vmul.f32 %v421, 0.5
        %v436 = vmul.f32 %v426, 0.5
        %v437 = vmul.f32 %v431, 0.5
        %v438 = vtanh.pop %v434
        %v439 = vtanh.pop %v435
        %v440 = vtanh.pop %v436
        %v441 = vtanh.pop %v437
        %v442 = vadd.f32 %v438, 1.0
        %v443 = vadd.f32 %v439, 1.0
        %v444 = vadd.f32 %v440, 1.0
        %v445 = vadd.f32 %v441, 1.0
        %v446 = vmul.f32 %v434, %v442
        %v447 = vmul.f32 %v435, %v443
        %v448 = vmul.f32 %v436, %v444
        %v449 = vmul.f32 %v437, %v445
        %v450 = vld [vmem:[%s2] sm:$0xff]
        %v451 = vld [vmem:[%s2 + $0x8] sm:$0xff]
        %v452 = vld [vmem:[%s2 + $0x10] sm:$0xff]
        %v453 = vld [vmem:[%s2 + $0x18] sm:$0xff]
        %454 = vset.pattern.permute.xlu0 1
        %455 = vperm.xlu0 %454, %v244
        %v456 = vpop.permute.xlu0 %455
        %458 = vset.pattern.permute.xlu0 1
        %459 = vperm.xlu0 %458, %v245
        %v460 = vpop.permute.xlu0 %459
        %462 = vset.pattern.permute.xlu0 1
        %463 = vperm.xlu0 %462, %v246
        %v464 = vpop.permute.xlu0 %463
        %466 = vset.pattern.permute.xlu0 1
        %467 = vperm.xlu0 %466, %v247
        %v468 = vpop.permute.xlu0 %467
        %vm470 = vcmask 261120
        %v472 = vsel %vm470, %v450, 0
        %v475 = vsel %vm470, %v451, 0
        %v478 = vsel %vm470, %v452, 0
        %v481 = vsel %vm470, %v453, 0
        %483 = vmatprep.subr.mxu0 0.0
        %484 = vmatpush1.msra.mxu0 0.0
        %485 = vmatprep.subr.mxu0 0.0
        %486 = vmatpush1.msra.mxu0 0.0
        %487 = vmatprep.subr.mxu0 0.0
        %488 = vmatpush1.msra.mxu0 0.0
        %489 = vmatprep.subr.mxu0 0.0
        %490 = vmatpush1.msra.mxu0 0.0
        %491 = vmatprep.subr.mxu0 0.0
        %492 = vmatpush1.msra.mxu0 0.0
        %493 = vmatprep.subr.mxu0 0.0
        %494 = vmatpush1.msra.mxu0 0.0
        %495 = vmatprep.subr.mxu0 0.0
        %496 = vmatpush1.msra.mxu0 0.0
        %497 = vmatprep.subr.mxu0 0.0
        %498 = vmatpush1.msra.mxu0 0.0
        %499 = vmatprep.subr.mxu0 0.0
        %500 = vmatpush1.msra.mxu0 0.0
        %501 = vmatprep.subr.mxu0 0.0
        %502 = vmatpush1.msra.mxu0 0.0
        %503 = vmatprep.subr.mxu0 0.0
        %504 = vmatpush1.msra.mxu0 0.0
        %505 = vmatprep.subr.mxu0 0.0
        %506 = vmatpush1.msra.mxu0 0.0
        %507 = vmatprep.subr.mxu0 0.0
        %508 = vmatpush1.msra.mxu0 %v449
        %509 = vmatprep.subr.mxu0 0.0
        %510 = vmatpush1.msra.mxu0 %v448
        %511 = vmatprep.subr.mxu0 0.0
        %512 = vmatpush1.msra.mxu0 %v447
        %513 = vmatprep.subr.mxu0 0.0
        %514 = vmatpush1.msra.mxu0 %v446
        %515 = vmatprep.subr.mxu0 0.0
        %516 = vmatpush2.msra.mxu0 0.0
        %517 = vmatprep.subr.mxu0 0.0
        %518 = vmatpush2.msra.mxu0 0.0
        %519 = vmatprep.subr.mxu0 0.0
        %520 = vmatpush2.msra.mxu0 0.0
        %521 = vmatprep.subr.mxu0 0.0
        %522 = vmatpush2.msra.mxu0 0.0
        %523 = vmatprep.subr.mxu0 0.0
        %524 = vmatpush2.msra.mxu0 0.0
        %525 = vmatprep.subr.mxu0 0.0
        %526 = vmatpush2.msra.mxu0 0.0
        %527 = vmatprep.subr.mxu0 0.0
        %528 = vmatpush2.msra.mxu0 0.0
        %529 = vmatprep.subr.mxu0 0.0
        %530 = vmatpush2.msra.mxu0 0.0
        %531 = vmatprep.subr.mxu0 0.0
        %532 = vmatpush2.msra.mxu0 0.0
        %533 = vmatprep.subr.mxu0 0.0
        %534 = vmatpush2.msra.mxu0 0.0
        %535 = vmatprep.subr.mxu0 0.0
        %536 = vmatpush2.msra.mxu0 0.0
        %537 = vmatprep.subr.mxu0 0.0
        %538 = vmatpush2.msra.mxu0 0.0
        %539 = vmatprep.subr.mxu0 0.0
        %540 = vmatpush2.msra.mxu0 0.0
        %541 = vmatprep.subr.mxu0 0.0
        %542 = vmatpush2.msra.mxu0 0.0
        %543 = vmatprep.subr.mxu0 0.0
        %544 = vmatpush2.msra.mxu0 0.0
        %545 = vmatprep.subr.mxu0 0.0
        %546 = vmatpush2.msra.mxu0 0.0
        %547 = vmatprep.mubr.f32.mxu0 0.0
        %548 = vmatmul.mubr.f32.gmra.mxu0 %v472
        %v549 = vpop.f32.mrf.mxu0
        %v550 = vadd.f32 %v456, %v549
        %v551 = vpop.f32.mrf.mxu0
        %552 = vmatprep.mubr.f32.mxu0 0.0
        %553 = vmatmul.mubr.f32.gmra.mxu0 %v475
        %v554 = vpop.f32.mrf.mxu0
        %v555 = vadd.f32 %v460, %v554
        %v556 = vpop.f32.mrf.mxu0
        %557 = vmatprep.mubr.f32.mxu0 0.0
        %558 = vmatmul.mubr.f32.gmra.mxu0 %v478
        %v559 = vpop.f32.mrf.mxu0
        %v560 = vadd.f32 %v464, %v559
        %v561 = vpop.f32.mrf.mxu0
        %562 = vmatprep.mubr.f32.mxu0 0.0
        %563 = vmatmul.mubr.f32.gmra.mxu0 %v481
        %v564 = vpop.f32.mrf.mxu0
        %v565 = vadd.f32 %v468, %v564
        %v566 = vpop.f32.mrf.mxu0
        %567 = vdwg.mxu0
        %v568 = vmul.f32 %v550, 0.5
        %v569 = vmul.f32 %v555, 0.5
        %v570 = vmul.f32 %v560, 0.5
        %v571 = vmul.f32 %v565, 0.5
        %v572 = vtanh.pop %v568
        %v573 = vtanh.pop %v569
        %v574 = vtanh.pop %v570
        %v575 = vtanh.pop %v571
        %v576 = vadd.f32 %v572, 1.0
        %v577 = vadd.f32 %v573, 1.0
        %v578 = vadd.f32 %v574, 1.0
        %v579 = vadd.f32 %v575, 1.0
        %v580 = vmul.f32 %v568, %v576
        %v581 = vmul.f32 %v569, %v577
        %v582 = vmul.f32 %v570, %v578
        %v583 = vmul.f32 %v571, %v579
        %s584 = scalar_lea.vmem %s2, 32
        %v585 = vld [vmem:[%s584] sm:$0xff]
        %v586 = vld [vmem:[%s584 + $0x8] sm:$0xff]
        %v587 = vld [vmem:[%s584 + $0x10] sm:$0xff]
        %v588 = vld [vmem:[%s584 + $0x18] sm:$0xff]
        %589 = vset.pattern.permute.xlu0 2
        %590 = vperm.xlu0 %589, %v244
        %v591 = vpop.permute.xlu0 %590
        %593 = vset.pattern.permute.xlu0 2
        %594 = vperm.xlu0 %593, %v245
        %v595 = vpop.permute.xlu0 %594
        %597 = vset.pattern.permute.xlu0 2
        %598 = vperm.xlu0 %597, %v246
        %v599 = vpop.permute.xlu0 %598
        %601 = vset.pattern.permute.xlu0 2
        %602 = vperm.xlu0 %601, %v247
        %v603 = vpop.permute.xlu0 %602
        %v606 = vsel %vm470, %v585, 0
        %v609 = vsel %vm470, %v586, 0
        %v612 = vsel %vm470, %v587, 0
        %v615 = vsel %vm470, %v588, 0
        %617 = vmatprep.subr.mxu0 0.0
        %618 = vmatpush1.msra.mxu0 0.0
        %619 = vmatprep.subr.mxu0 0.0
        %620 = vmatpush1.msra.mxu0 0.0
        %621 = vmatprep.subr.mxu0 0.0
        %622 = vmatpush1.msra.mxu0 0.0
        %623 = vmatprep.subr.mxu0 0.0
        %624 = vmatpush1.msra.mxu0 0.0
        %625 = vmatprep.subr.mxu0 0.0
        %626 = vmatpush1.msra.mxu0 0.0
        %627 = vmatprep.subr.mxu0 0.0
        %628 = vmatpush1.msra.mxu0 0.0
        %629 = vmatprep.subr.mxu0 0.0
        %630 = vmatpush1.msra.mxu0 0.0
        %631 = vmatprep.subr.mxu0 0.0
        %632 = vmatpush1.msra.mxu0 0.0
        %633 = vmatprep.subr.mxu0 0.0
        %634 = vmatpush1.msra.mxu0 0.0
        %635 = vmatprep.subr.mxu0 0.0
        %636 = vmatpush1.msra.mxu0 0.0
        %637 = vmatprep.subr.mxu0 0.0
        %638 = vmatpush1.msra.mxu0 0.0
        %639 = vmatprep.subr.mxu0 0.0
        %640 = vmatpush1.msra.mxu0 0.0
        %641 = vmatprep.subr.mxu0 0.0
        %642 = vmatpush1.msra.mxu0 %v583
        %643 = vmatprep.subr.mxu0 0.0
        %644 = vmatpush1.msra.mxu0 %v582
        %645 = vmatprep.subr.mxu0 0.0
        %646 = vmatpush1.msra.mxu0 %v581
        %647 = vmatprep.subr.mxu0 0.0
        %648 = vmatpush1.msra.mxu0 %v580
        %649 = vmatprep.subr.mxu0 0.0
        %650 = vmatpush2.msra.mxu0 0.0
        %651 = vmatprep.subr.mxu0 0.0
        %652 = vmatpush2.msra.mxu0 0.0
        %653 = vmatprep.subr.mxu0 0.0
        %654 = vmatpush2.msra.mxu0 0.0
        %655 = vmatprep.subr.mxu0 0.0
        %656 = vmatpush2.msra.mxu0 0.0
        %657 = vmatprep.subr.mxu0 0.0
        %658 = vmatpush2.msra.mxu0 0.0
        %659 = vmatprep.subr.mxu0 0.0
        %660 = vmatpush2.msra.mxu0 0.0
        %661 = vmatprep.subr.mxu0 0.0
        %662 = vmatpush2.msra.mxu0 0.0
        %663 = vmatprep.subr.mxu0 0.0
        %664 = vmatpush2.msra.mxu0 0.0
        %665 = vmatprep.subr.mxu0 0.0
        %666 = vmatpush2.msra.mxu0 0.0
        %667 = vmatprep.subr.mxu0 0.0
        %668 = vmatpush2.msra.mxu0 0.0
        %669 = vmatprep.subr.mxu0 0.0
        %670 = vmatpush2.msra.mxu0 0.0
        %671 = vmatprep.subr.mxu0 0.0
        %672 = vmatpush2.msra.mxu0 0.0
        %673 = vmatprep.subr.mxu0 0.0
        %674 = vmatpush2.msra.mxu0 0.0
        %675 = vmatprep.subr.mxu0 0.0
        %676 = vmatpush2.msra.mxu0 0.0
        %677 = vmatprep.subr.mxu0 0.0
        %678 = vmatpush2.msra.mxu0 0.0
        %679 = vmatprep.subr.mxu0 0.0
        %680 = vmatpush2.msra.mxu0 0.0
        %681 = vmatprep.mubr.f32.mxu0 0.0
        %682 = vmatmul.mubr.f32.gmra.mxu0 %v606
        %v683 = vpop.f32.mrf.mxu0
        %v684 = vadd.f32 %v591, %v683
        %v685 = vpop.f32.mrf.mxu0
        %686 = vmatprep.mubr.f32.mxu0 0.0
        %687 = vmatmul.mubr.f32.gmra.mxu0 %v609
        %v688 = vpop.f32.mrf.mxu0
        %v689 = vadd.f32 %v595, %v688
        %v690 = vpop.f32.mrf.mxu0
        %691 = vmatprep.mubr.f32.mxu0 0.0
        %692 = vmatmul.mubr.f32.gmra.mxu0 %v612
        %v693 = vpop.f32.mrf.mxu0
        %v694 = vadd.f32 %v599, %v693
        %v695 = vpop.f32.mrf.mxu0
        %696 = vmatprep.mubr.f32.mxu0 0.0
        %697 = vmatmul.mubr.f32.gmra.mxu0 %v615
        %v698 = vpop.f32.mrf.mxu0
        %v699 = vadd.f32 %v603, %v698
        %v700 = vpop.f32.mrf.mxu0
        %701 = vdwg.mxu0
        %v702 = vmul.f32 %v684, 0.5
        %v703 = vmul.f32 %v689, 0.5
        %v704 = vmul.f32 %v694, 0.5
        %v705 = vmul.f32 %v699, 0.5
        %v706 = vtanh.pop %v702
        %v707 = vtanh.pop %v703
        %v708 = vtanh.pop %v704
        %v709 = vtanh.pop %v705
        %v710 = vadd.f32 %v706, 1.0
        %v711 = vadd.f32 %v707, 1.0
        %v712 = vadd.f32 %v708, 1.0
        %v713 = vadd.f32 %v709, 1.0
        %v714 = vmul.f32 %v702, %v710
        %v715 = vmul.f32 %v703, %v711
        %v716 = vmul.f32 %v704, %v712
        %v717 = vmul.f32 %v705, %v713
        %s718 = scalar_lea.vmem %s2, 64
        %v719 = vld [vmem:[%s718] sm:$0xff]
        %v720 = vld [vmem:[%s718 + $0x8] sm:$0xff]
        %v721 = vld [vmem:[%s718 + $0x10] sm:$0xff]
        %v722 = vld [vmem:[%s718 + $0x18] sm:$0xff]
        %723 = vset.pattern.permute.xlu0 3
        %724 = vperm.xlu0 %723, %v244
        %v725 = vpop.permute.xlu0 %724
        %727 = vset.pattern.permute.xlu0 3
        %728 = vperm.xlu0 %727, %v245
        %v729 = vpop.permute.xlu0 %728
        %731 = vset.pattern.permute.xlu0 3
        %732 = vperm.xlu0 %731, %v246
        %v733 = vpop.permute.xlu0 %732
        %735 = vset.pattern.permute.xlu0 3
        %736 = vperm.xlu0 %735, %v247
        %v737 = vpop.permute.xlu0 %736
        %v740 = vsel %vm470, %v719, 0
        %v743 = vsel %vm470, %v720, 0
        %v746 = vsel %vm470, %v721, 0
        %v749 = vsel %vm470, %v722, 0
        %751 = vmatprep.subr.mxu0 0.0
        %752 = vmatpush1.msra.mxu0 0.0
        %753 = vmatprep.subr.mxu0 0.0
        %754 = vmatpush1.msra.mxu0 0.0
        %755 = vmatprep.subr.mxu0 0.0
        %756 = vmatpush1.msra.mxu0 0.0
        %757 = vmatprep.subr.mxu0 0.0
        %758 = vmatpush1.msra.mxu0 0.0
        %759 = vmatprep.subr.mxu0 0.0
        %760 = vmatpush1.msra.mxu0 0.0
        %761 = vmatprep.subr.mxu0 0.0
        %762 = vmatpush1.msra.mxu0 0.0
        %763 = vmatprep.subr.mxu0 0.0
        %764 = vmatpush1.msra.mxu0 0.0
        %765 = vmatprep.subr.mxu0 0.0
        %766 = vmatpush1.msra.mxu0 0.0
        %767 = vmatprep.subr.mxu0 0.0
        %768 = vmatpush1.msra.mxu0 0.0
        %769 = vmatprep.subr.mxu0 0.0
        %770 = vmatpush1.msra.mxu0 0.0
        %771 = vmatprep.subr.mxu0 0.0
        %772 = vmatpush1.msra.mxu0 0.0
        %773 = vmatprep.subr.mxu0 0.0
        %774 = vmatpush1.msra.mxu0 0.0
        %775 = vmatprep.subr.mxu0 0.0
        %776 = vmatpush1.msra.mxu0 %v717
        %777 = vmatprep.subr.mxu0 0.0
        %778 = vmatpush1.msra.mxu0 %v716
        %779 = vmatprep.subr.mxu0 0.0
        %780 = vmatpush1.msra.mxu0 %v715
        %781 = vmatprep.subr.mxu0 0.0
        %782 = vmatpush1.msra.mxu0 %v714
        %783 = vmatprep.subr.mxu0 0.0
        %784 = vmatpush2.msra.mxu0 0.0
        %785 = vmatprep.subr.mxu0 0.0
        %786 = vmatpush2.msra.mxu0 0.0
        %787 = vmatprep.subr.mxu0 0.0
        %788 = vmatpush2.msra.mxu0 0.0
        %789 = vmatprep.subr.mxu0 0.0
        %790 = vmatpush2.msra.mxu0 0.0
        %791 = vmatprep.subr.mxu0 0.0
        %792 = vmatpush2.msra.mxu0 0.0
        %793 = vmatprep.subr.mxu0 0.0
        %794 = vmatpush2.msra.mxu0 0.0
        %795 = vmatprep.subr.mxu0 0.0
        %796 = vmatpush2.msra.mxu0 0.0
        %797 = vmatprep.subr.mxu0 0.0
        %798 = vmatpush2.msra.mxu0 0.0
        %799 = vmatprep.subr.mxu0 0.0
        %800 = vmatpush2.msra.mxu0 0.0
        %801 = vmatprep.subr.mxu0 0.0
        %802 = vmatpush2.msra.mxu0 0.0
        %803 = vmatprep.subr.mxu0 0.0
        %804 = vmatpush2.msra.mxu0 0.0
        %805 = vmatprep.subr.mxu0 0.0
        %806 = vmatpush2.msra.mxu0 0.0
        %807 = vmatprep.subr.mxu0 0.0
        %808 = vmatpush2.msra.mxu0 0.0
        %809 = vmatprep.subr.mxu0 0.0
        %810 = vmatpush2.msra.mxu0 0.0
        %811 = vmatprep.subr.mxu0 0.0
        %812 = vmatpush2.msra.mxu0 0.0
        %813 = vmatprep.subr.mxu0 0.0
        %814 = vmatpush2.msra.mxu0 0.0
        %815 = vmatprep.mubr.f32.mxu0 0.0
        %816 = vmatmul.mubr.f32.gmra.mxu0 %v740
        %v817 = vpop.f32.mrf.mxu0
        %v818 = vadd.f32 %v725, %v817
        %v819 = vpop.f32.mrf.mxu0
        %820 = vmatprep.mubr.f32.mxu0 0.0
        %821 = vmatmul.mubr.f32.gmra.mxu0 %v743
        %v822 = vpop.f32.mrf.mxu0
        %v823 = vadd.f32 %v729, %v822
        %v824 = vpop.f32.mrf.mxu0
        %825 = vmatprep.mubr.f32.mxu0 0.0
        %826 = vmatmul.mubr.f32.gmra.mxu0 %v746
        %v827 = vpop.f32.mrf.mxu0
        %v828 = vadd.f32 %v733, %v827
        %v829 = vpop.f32.mrf.mxu0
        %830 = vmatprep.mubr.f32.mxu0 0.0
        %831 = vmatmul.mubr.f32.gmra.mxu0 %v749
        %v832 = vpop.f32.mrf.mxu0
        %v833 = vadd.f32 %v737, %v832
        %v834 = vpop.f32.mrf.mxu0
        %835 = vdwg.mxu0
        %v836 = vmul.f32 %v818, 0.5
        %v837 = vmul.f32 %v823, 0.5
        %v838 = vmul.f32 %v828, 0.5
        %v839 = vmul.f32 %v833, 0.5
        %v840 = vtanh.pop %v836
        %v841 = vtanh.pop %v837
        %v842 = vtanh.pop %v838
        %v843 = vtanh.pop %v839
        %v844 = vadd.f32 %v840, 1.0
        %v845 = vadd.f32 %v841, 1.0
        %v846 = vadd.f32 %v842, 1.0
        %v847 = vadd.f32 %v843, 1.0
        %v848 = vmul.f32 %v836, %v844
        %v849 = vmul.f32 %v837, %v845
        %v850 = vmul.f32 %v838, %v846
        %v851 = vmul.f32 %v839, %v847
        %s852 = scalar_lea.vmem %s2, 96
        %v853 = vld [vmem:[%s852] sm:$0xff]
        %v854 = vld [vmem:[%s852 + $0x8] sm:$0xff]
        %v855 = vld [vmem:[%s852 + $0x10] sm:$0xff]
        %v856 = vld [vmem:[%s852 + $0x18] sm:$0xff]
        %857 = vset.pattern.permute.xlu0 4
        %858 = vperm.xlu0 %857, %v244
        %v859 = vpop.permute.xlu0 %858
        %861 = vset.pattern.permute.xlu0 4
        %862 = vperm.xlu0 %861, %v245
        %v863 = vpop.permute.xlu0 %862
        %865 = vset.pattern.permute.xlu0 4
        %866 = vperm.xlu0 %865, %v246
        %v867 = vpop.permute.xlu0 %866
        %869 = vset.pattern.permute.xlu0 4
        %870 = vperm.xlu0 %869, %v247
        %v871 = vpop.permute.xlu0 %870
        %v874 = vsel %vm470, %v853, 0
        %v877 = vsel %vm470, %v854, 0
        %v880 = vsel %vm470, %v855, 0
        %v883 = vsel %vm470, %v856, 0
        %885 = vmatprep.subr.mxu0 0.0
        %886 = vmatpush1.msra.mxu0 0.0
        %887 = vmatprep.subr.mxu0 0.0
        %888 = vmatpush1.msra.mxu0 0.0
        %889 = vmatprep.subr.mxu0 0.0
        %890 = vmatpush1.msra.mxu0 0.0
        %891 = vmatprep.subr.mxu0 0.0
        %892 = vmatpush1.msra.mxu0 0.0
        %893 = vmatprep.subr.mxu0 0.0
        %894 = vmatpush1.msra.mxu0 0.0
        %895 = vmatprep.subr.mxu0 0.0
        %896 = vmatpush1.msra.mxu0 0.0
        %897 = vmatprep.subr.mxu0 0.0
        %898 = vmatpush1.msra.mxu0 0.0
        %899 = vmatprep.subr.mxu0 0.0
        %900 = vmatpush1.msra.mxu0 0.0
        %901 = vmatprep.subr.mxu0 0.0
        %902 = vmatpush1.msra.mxu0 0.0
        %903 = vmatprep.subr.mxu0 0.0
        %904 = vmatpush1.msra.mxu0 0.0
        %905 = vmatprep.subr.mxu0 0.0
        %906 = vmatpush1.msra.mxu0 0.0
        %907 = vmatprep.subr.mxu0 0.0
        %908 = vmatpush1.msra.mxu0 0.0
        %909 = vmatprep.subr.mxu0 0.0
        %910 = vmatpush1.msra.mxu0 %v851
        %911 = vmatprep.subr.mxu0 0.0
        %912 = vmatpush1.msra.mxu0 %v850
        %913 = vmatprep.subr.mxu0 0.0
        %914 = vmatpush1.msra.mxu0 %v849
        %915 = vmatprep.subr.mxu0 0.0
        %916 = vmatpush1.msra.mxu0 %v848
        %917 = vmatprep.subr.mxu0 0.0
        %918 = vmatpush2.msra.mxu0 0.0
        %919 = vmatprep.subr.mxu0 0.0
        %920 = vmatpush2.msra.mxu0 0.0
        %921 = vmatprep.subr.mxu0 0.0
        %922 = vmatpush2.msra.mxu0 0.0
        %923 = vmatprep.subr.mxu0 0.0
        %924 = vmatpush2.msra.mxu0 0.0
        %925 = vmatprep.subr.mxu0 0.0
        %926 = vmatpush2.msra.mxu0 0.0
        %927 = vmatprep.subr.mxu0 0.0
        %928 = vmatpush2.msra.mxu0 0.0
        %929 = vmatprep.subr.mxu0 0.0
        %930 = vmatpush2.msra.mxu0 0.0
        %931 = vmatprep.subr.mxu0 0.0
        %932 = vmatpush2.msra.mxu0 0.0
        %933 = vmatprep.subr.mxu0 0.0
        %934 = vmatpush2.msra.mxu0 0.0
        %935 = vmatprep.subr.mxu0 0.0
        %936 = vmatpush2.msra.mxu0 0.0
        %937 = vmatprep.subr.mxu0 0.0
        %938 = vmatpush2.msra.mxu0 0.0
        %939 = vmatprep.subr.mxu0 0.0
        %940 = vmatpush2.msra.mxu0 0.0
        %941 = vmatprep.subr.mxu0 0.0
        %942 = vmatpush2.msra.mxu0 0.0
        %943 = vmatprep.subr.mxu0 0.0
        %944 = vmatpush2.msra.mxu0 0.0
        %945 = vmatprep.subr.mxu0 0.0
        %946 = vmatpush2.msra.mxu0 0.0
        %947 = vmatprep.subr.mxu0 0.0
        %948 = vmatpush2.msra.mxu0 0.0
        %949 = vmatprep.mubr.f32.mxu0 0.0
        %950 = vmatmul.mubr.f32.gmra.mxu0 %v874
        %v951 = vpop.f32.mrf.mxu0
        %v952 = vadd.f32 %v859, %v951
        %v953 = vpop.f32.mrf.mxu0
        %954 = vmatprep.mubr.f32.mxu0 0.0
        %955 = vmatmul.mubr.f32.gmra.mxu0 %v877
        %v956 = vpop.f32.mrf.mxu0
        %v957 = vadd.f32 %v863, %v956
        %v958 = vpop.f32.mrf.mxu0
        %959 = vmatprep.mubr.f32.mxu0 0.0
        %960 = vmatmul.mubr.f32.gmra.mxu0 %v880
        %v961 = vpop.f32.mrf.mxu0
        %v962 = vadd.f32 %v867, %v961
        %v963 = vpop.f32.mrf.mxu0
        %964 = vmatprep.mubr.f32.mxu0 0.0
        %965 = vmatmul.mubr.f32.gmra.mxu0 %v883
        %v966 = vpop.f32.mrf.mxu0
        %v967 = vadd.f32 %v871, %v966
        %v968 = vpop.f32.mrf.mxu0
        %969 = vdwg.mxu0
        %v970 = vmul.f32 %v952, 0.5
        %v971 = vmul.f32 %v957, 0.5
        %v972 = vmul.f32 %v962, 0.5
        %v973 = vmul.f32 %v967, 0.5
        %v974 = vtanh.pop %v970
        %v975 = vtanh.pop %v971
        %v976 = vtanh.pop %v972
        %v977 = vtanh.pop %v973
        %v978 = vadd.f32 %v974, 1.0
        %v979 = vadd.f32 %v975, 1.0
        %v980 = vadd.f32 %v976, 1.0
        %v981 = vadd.f32 %v977, 1.0
        %v982 = vmul.f32 %v970, %v978
        %v983 = vmul.f32 %v971, %v979
        %v984 = vmul.f32 %v972, %v980
        %v985 = vmul.f32 %v973, %v981
        %v986 = vld [vmem:[%s3] sm:$0xff]
        %v987 = vld [vmem:[%s3 + $0x8] sm:$0xff]
        %v988 = vld [vmem:[%s3 + $0x10] sm:$0xff]
        %v989 = vld [vmem:[%s3 + $0x18] sm:$0xff]
        %991 = vset.pattern.permute.xlu0 0
        %992 = vperm.xlu0 %991, %v986
        %v993 = vpop.permute.xlu0 %992
        %996 = vset.pattern.permute.xlu0 0
        %997 = vperm.xlu0 %996, %v987
        %v998 = vpop.permute.xlu0 %997
        %1001 = vset.pattern.permute.xlu0 0
        %1002 = vperm.xlu0 %1001, %v988
        %v1003 = vpop.permute.xlu0 %1002
        %1006 = vset.pattern.permute.xlu0 0
        %1007 = vperm.xlu0 %1006, %v989
        %v1008 = vpop.permute.xlu0 %1007
        %v1010 = vmul.f32 %v993, %v982
        %v1011 = vmul.f32 %v998, %v983
        %v1012 = vmul.f32 %v1003, %v984
        %v1013 = vmul.f32 %v1008, %v985
        %v1014 = vadd.f32 %v1010, %v1011
        %v1015 = vadd.f32 %v1014, %v1012
        %v1016 = vadd.f32 %v1015, %v1013
        %v1017 = vrot.slane %v1016, 4
        %v1018 = vadd.f32 %v1016, %v1017
        %v1019 = vrot.slane %v1018, 2
        %v1020 = vadd.f32 %v1018, %v1019
        %v1021 = vrot.slane %v1020, 1
        %v1022 = vadd.f32 %v1020, %v1021
        %v1023 = vld [vmem:[%s4] sm:$0x1]
        %1025 = vset.pattern.permute.xlu0 5
        %1026 = vperm.xlu0 %1025, %v1023
        %v1027 = vpop.permute.xlu0 %1026
        %v1029 = vadd.f32 %v1022, %v1027
        %1030 = vst [vmem:[%s229] sm:$0x1] %v1029
        %s1031 = sand.u32 %s137, 1
        %s1032 = scalar_lea.sflag [#allocation3], %s1031
        %s1033 = sand.u32 %s137, 1
        %s1034 = scalar_lea.vmem [#allocation2], %s1033
        // Predicated region
        $region41: #{tpu_custom_call.1} parent=39 // pred_check
          %p1035 = pneg %p147
        $region42: #{tpu_custom_call.1} parent=39 // pred_check_branch
          %1037 = sbr.rel (%p1035) target = $region44
        $region43: #{tpu_custom_call.1} parent=39 // pred_region
          %s1039 = ssub.s32 16, 16
          %1040 = vsyncadd %s1032, %s1039
          %s1041 = smul.addr %s19, 16
          %s1042 = scalar_lea.hbm %s5, %s1041
          %s1044 = sshll.u32 %s1034, 4
          %s1045 = int_to_ptr.vmem [resolvable:$true] %s1044
          %1047 = dma.vmem_to_hbm [thread:$0]  %s1045, 16, %s1042, %s1032
        $region44: #{tpu_custom_call.1} parent=39 // pred_fallthru
          _
      $region40: #{tpu_custom_call.1} parent=5 // pred_fallthru
        _
      %p1048 = scmp.le.s32.totalorder 2, %s14
      // Predicated region
      $region45: #{tpu_custom_call.1} parent=5 // pred_check
        %p1049 = pneg %p1048
      $region46: #{tpu_custom_call.1} parent=5 // pred_check_branch
        %1051 = sbr.rel (%p1049) target = $region48
      $region47: #{tpu_custom_call.1} parent=5 // pred_region
        %s1052 = ssub.s32 %s14, 2
        // Predicated region
        $region49: #{tpu_custom_call.1} parent=47 // pred_check
          %p1053 = pneg %p153
        $region50: #{tpu_custom_call.1} parent=47 // pred_check_branch
          %1055 = sbr.rel (%p1053) target = $region52
        $region51: #{tpu_custom_call.1} parent=47 // pred_region
          %s1056 = sand.u32 %s138, 1
          %s1057 = scalar_lea.sflag [#allocation3], %s1056
          %s1058 = sand.u32 %s138, 1
          %s1059 = scalar_lea.vmem [#allocation2], %s1058
          %1060 = dma.done %s1057, 16
        $region52: #{tpu_custom_call.1} parent=47 // pred_fallthru
          _
      $region48: #{tpu_custom_call.1} parent=5 // pred_fallthru
        _
    $region6: #{tpu_custom_call.1} parent=1 // loop_footer
      %s18 = sadd.s32 1, %s14
    $region7: #{tpu_custom_call.1} parent=1 // loop_footer_branch
      %13 = sbr.rel target = $region3
    $region8: #{tpu_custom_call.1} parent=1 // loop_exit
      _
    %1061 = vsyncpa [#allocation3], 1
    %s1062 = scalar_lea.sflag [#allocation3], 1
    %1063 = vsyncpa %s1062, 1

</llo_original>
